<compile_context>
chip_gen: v5e
topology: v5e:2x2
jax: 0.10.0
libtpu: 0.0.40
codegen_flags: <defaults>
</compile_context>

<pallas_src>
import jax
import jax.numpy as jnp
from jax.experimental import pallas as pl
from jax.experimental.pallas import tpu as pltpu


def _round_up(v: int, m: int) -> int:
    return ((v + m - 1) // m) * m


def _fused_gcn2_kernel(a_ref, x_ref, w1_ref, b1_ref, w2_ref, b2_ref, o_ref):
    # Layer 1: h = ReLU(A_hat @ (x @ W1) + b1)   -- two chained MXU matmuls.
    xw1 = jnp.dot(x_ref[...], w1_ref[...], preferred_element_type=jnp.float32)
    h = jnp.dot(a_ref[...], xw1, preferred_element_type=jnp.float32)
    h = jnp.maximum(h + b1_ref[...], 0.0)
    # Layer 2: z = A_hat @ (h @ W2) + b2  (no activation); h never leaves VMEM.
    hw2 = jnp.dot(h, w2_ref[...], preferred_element_type=jnp.float32)
    z = jnp.dot(a_ref[...], hw2, preferred_element_type=jnp.float32)
    o_ref[...] = (z + b2_ref[...]).astype(o_ref.dtype)


def fused_gcn_encoder(a_hat, x, w1, b1, w2, b2):
    """z = A_hat @ (ReLU(A_hat @ (x @ W1) + b1) @ W2) + b2, one fused kernel."""
    n, f_in = x.shape
    f_hid = w1.shape[1]
    f_out = w2.shape[1]

    n_p = _round_up(n, 128)        # node dim (sublanes + A_hat lane dim)
    f_in_p = _round_up(f_in, 128)  # feature lane dims
    f_hid_p = _round_up(f_hid, 128)
    f_out_p = _round_up(f_out, 128)

    a_p = jnp.zeros((n_p, n_p), jnp.float32).at[:n, :n].set(a_hat)
    x_p = jnp.zeros((n_p, f_in_p), jnp.float32).at[:n, :f_in].set(x)
    w1_p = jnp.zeros((f_in_p, f_hid_p), jnp.float32).at[:f_in, :f_hid].set(w1)
    b1_p = jnp.zeros((1, f_hid_p), jnp.float32).at[0, :f_hid].set(b1)
    w2_p = jnp.zeros((f_hid_p, f_out_p), jnp.float32).at[:f_hid, :f_out].set(w2)
    b2_p = jnp.zeros((1, f_out_p), jnp.float32).at[0, :f_out].set(b2)

    full = lambda shape: pl.BlockSpec(shape, lambda: (0,) * len(shape))

    z_p = pl.pallas_call(
        _fused_gcn2_kernel,
        out_shape=jax.ShapeDtypeStruct((n_p, f_out_p), jnp.float32),
        in_specs=[
            full(a_p.shape),
            full(x_p.shape),
            full(w1_p.shape),
            full(b1_p.shape),
            full(w2_p.shape),
            full(b2_p.shape),
        ],
        out_specs=full((n_p, f_out_p)),
        compiler_params=pltpu.CompilerParams(
            vmem_limit_bytes=96 * 1024 * 1024,
        ),
    )(a_p, x_p, w1_p, b1_p, w2_p, b2_p)

    return z_p[:n, :f_out]


def build_normalized_adjacency(edge_index, num_nodes):
    """Dense A_hat = D^-1/2 (A + I) D^-1/2 from a (2, E) edge_index (JAX glue)."""
    row, col = edge_index[0], edge_index[1]
    adj = jnp.zeros((num_nodes, num_nodes), dtype=jnp.float32)
    adj = adj.at[row, col].set(1.0)
    adj = adj + jnp.eye(num_nodes, dtype=jnp.float32)  # self loops
    deg = adj.sum(axis=1)
    d_inv_sqrt = 1.0 / jnp.sqrt(jnp.maximum(deg, 1e-12))
    return d_inv_sqrt[:, None] * adj * d_inv_sqrt[None, :]


@jax.jit
def _forward(x, edge_index, w1, b1, w2, b2):
    a_hat = build_normalized_adjacency(edge_index, x.shape[0])
    return fused_gcn_encoder(a_hat, x, w1, b1, w2, b2)


class PallasGCNEncoderModel:
    """JAX/Pallas equivalent of Model.forward (== Encoder(x, edge_index))."""

    def __init__(self, in_channels, num_hidden, key):
        k1, k2, k3, k4 = jax.random.split(key, 4)
        s1 = 1.0 / jnp.sqrt(jnp.float32(in_channels))
        s2 = 1.0 / jnp.sqrt(jnp.float32(num_hidden))
        self.w1 = jax.random.uniform(k1, (in_channels, num_hidden),
                                     jnp.float32, -s1, s1)
        self.b1 = jax.random.uniform(k2, (num_hidden,), jnp.float32, -s1, s1)
        self.w2 = jax.random.uniform(k3, (num_hidden, num_hidden),
                                     jnp.float32, -s2, s2)
        self.b2 = jax.random.uniform(k4, (num_hidden,), jnp.float32, -s2, s2)

    def forward(self, x, edge_index):
        return _forward(x, edge_index, self.w1, self.b1, self.w2, self.b2)


def _reference_forward(x, edge_index, w1, b1, w2, b2):
    """Pure-JAX reference of the same 2-layer GCN (for in-script validation)."""
    a_hat = build_normalized_adjacency(edge_index, x.shape[0])
    h = jnp.maximum(a_hat @ (x @ w1) + b1[None, :], 0.0)
    return a_hat @ (h @ w2) + b2[None, :]


if __name__ == "__main__":
    key = jax.random.PRNGKey(0)
    k_x, k_model = jax.random.split(key)

    num_nodes = 16
    in_channels = 32
    num_hidden = 32

    # Node features
    x = jax.random.normal(k_x, (num_nodes, in_channels), dtype=jnp.float32)

    # Deterministic ring graph (undirected: both edge directions)
    src = jnp.arange(num_nodes, dtype=jnp.int32)
    dst = (src + 1) % num_nodes
    edge_index = jnp.stack(
        [jnp.concatenate([src, dst]), jnp.concatenate([dst, src])], axis=0
    )

    model = PallasGCNEncoderModel(in_channels, num_hidden, k_model)
    z = model.forward(x, edge_index)
    jax.block_until_ready(z)

    assert z.shape == (num_nodes, num_hidden)
    assert jnp.all(jnp.isfinite(z))

    z_ref = _reference_forward(x, edge_index, model.w1, model.b1,
                               model.w2, model.b2)
    assert jnp.allclose(z, z_ref, atol=1e-4, rtol=1e-4)
    print("KERNEL_OK")
</pallas_src>

<mosaic_0001>
module attributes {stable_mosaic.version = 11 : i64} {
  func.func @_fused_gcn2_kernel(%arg0: memref<128x128xf32, #tpu.memory_space<vmem>>, %arg1: memref<128x128xf32, #tpu.memory_space<vmem>>, %arg2: memref<128x128xf32, #tpu.memory_space<vmem>>, %arg3: memref<1x128xf32, #tpu.memory_space<vmem>>, %arg4: memref<128x128xf32, #tpu.memory_space<vmem>>, %arg5: memref<1x128xf32, #tpu.memory_space<vmem>>, %arg6: memref<128x128xf32, #tpu.memory_space<vmem>>) attributes {dimension_semantics = [], scalar_prefetch = 0 : i64, scratch_operands = 0 : i64, tpu.core_type = #tpu.core_type<tc>} {
    %c0 = arith.constant 0 : index
    %c0_0 = arith.constant 0 : index
    %0 = vector.load %arg1[%c0, %c0_0] : memref<128x128xf32, #tpu.memory_space<vmem>>, vector<128x128xf32>
    %c0_1 = arith.constant 0 : index
    %c0_2 = arith.constant 0 : index
    %1 = vector.load %arg2[%c0_1, %c0_2] : memref<128x128xf32, #tpu.memory_space<vmem>>, vector<128x128xf32>
    %cst = arith.constant dense<0.000000e+00> : vector<128x128xf32>
    %2 = tpu.matmul %0, %1, %cst {dimension_numbers = #tpu.dot_dimension_numbers<[1], [0], [0], [1], [0, 0, 1, 1], [], []>} : vector<128x128xf32>, vector<128x128xf32>, vector<128x128xf32> -> vector<128x128xf32>
    %c0_3 = arith.constant 0 : index
    %c0_4 = arith.constant 0 : index
    %3 = vector.load %arg0[%c0_3, %c0_4] : memref<128x128xf32, #tpu.memory_space<vmem>>, vector<128x128xf32>
    %cst_5 = arith.constant dense<0.000000e+00> : vector<128x128xf32>
    %4 = tpu.matmul %3, %2, %cst_5 {dimension_numbers = #tpu.dot_dimension_numbers<[1], [0], [0], [1], [0, 0, 1, 1], [], []>} : vector<128x128xf32>, vector<128x128xf32>, vector<128x128xf32> -> vector<128x128xf32>
    %c0_6 = arith.constant 0 : index
    %c0_7 = arith.constant 0 : index
    %5 = vector.load %arg3[%c0_6, %c0_7] : memref<1x128xf32, #tpu.memory_space<vmem>>, vector<1x128xf32>
    %6 = vector.broadcast %5 : vector<1x128xf32> to vector<128x128xf32>
    %7 = arith.addf %4, %6 : vector<128x128xf32>
    %cst_8 = arith.constant 0.000000e+00 : f32
    %8 = vector.broadcast %cst_8 : f32 to vector<128x128xf32>
    %9 = arith.maximumf %7, %8 : vector<128x128xf32>
    %c0_9 = arith.constant 0 : index
    %c0_10 = arith.constant 0 : index
    %10 = vector.load %arg4[%c0_9, %c0_10] : memref<128x128xf32, #tpu.memory_space<vmem>>, vector<128x128xf32>
    %cst_11 = arith.constant dense<0.000000e+00> : vector<128x128xf32>
    %11 = tpu.matmul %9, %10, %cst_11 {dimension_numbers = #tpu.dot_dimension_numbers<[1], [0], [0], [1], [0, 0, 1, 1], [], []>} : vector<128x128xf32>, vector<128x128xf32>, vector<128x128xf32> -> vector<128x128xf32>
    %c0_12 = arith.constant 0 : index
    %c0_13 = arith.constant 0 : index
    %12 = vector.load %arg0[%c0_12, %c0_13] : memref<128x128xf32, #tpu.memory_space<vmem>>, vector<128x128xf32>
    %cst_14 = arith.constant dense<0.000000e+00> : vector<128x128xf32>
    %13 = tpu.matmul %12, %11, %cst_14 {dimension_numbers = #tpu.dot_dimension_numbers<[1], [0], [0], [1], [0, 0, 1, 1], [], []>} : vector<128x128xf32>, vector<128x128xf32>, vector<128x128xf32> -> vector<128x128xf32>
    %c0_15 = arith.constant 0 : index
    %c0_16 = arith.constant 0 : index
    %14 = vector.load %arg5[%c0_15, %c0_16] : memref<1x128xf32, #tpu.memory_space<vmem>>, vector<1x128xf32>
    %15 = vector.broadcast %14 : vector<1x128xf32> to vector<128x128xf32>
    %16 = arith.addf %13, %15 : vector<128x128xf32>
    %c0_17 = arith.constant 0 : index
    %c0_18 = arith.constant 0 : index
    %17 = vector.load %arg6[%c0_17, %c0_18] : memref<128x128xf32, #tpu.memory_space<vmem>>, vector<128x128xf32>
    tpu.vector_store %arg6[%c0_17, %c0_18], %16 {strides = array<i32>} : memref<128x128xf32, #tpu.memory_space<vmem>>, vector<128x128xf32>,
    return
  }
}

</mosaic_0001>

<llo_original>
// kernel: _forward.1
$region0: #{_forward.1}
  #allocation0 [shape = 'u32[]', space=smem, size = 0x4, offset = 0x4, fixed_abs, tag = 'smem constant byte address 0x4 - core index']
  #allocation1 [shape = 'u32[72,128]{1,0:T(1,128)}', space=vmem, size = 0x9000, scoped, tag = 'internal scratch']
  %s0 = inlined_call_operand.vmem [shape: f32[128,128], index: 0, kind: input, shape index: {}]
  %s1 = inlined_call_operand.vmem [shape: f32[128,128], index: 1, kind: input, shape index: {}]
  %s2 = inlined_call_operand.vmem [shape: f32[128,128], index: 2, kind: input, shape index: {}]
  %s3 = inlined_call_operand.vmem [shape: f32[1,128], index: 3, kind: input, shape index: {}]
  %s4 = inlined_call_operand.vmem [shape: f32[128,128], index: 4, kind: input, shape index: {}]
  %s5 = inlined_call_operand.vmem [shape: f32[1,128], index: 5, kind: input, shape index: {}]
  %s6 = inlined_call_operand.vmem [shape: f32[128,128], index: 6, kind: output, shape index: {}]
  %s7 = sld [smem:[#allocation0]]
  $region34: #{_forward.1} parent=0
    _
  %s9 = ssub.s32 1, %s7
  %s10 = scalar_select 0, %s9, %s7
  // Predicated region
  $region2: #{_forward.1} parent=0 // pred_check
    _
  $region3: #{_forward.1} parent=0 // pred_check_branch
    %12 = sbr.rel (0) target = $region5
  $region4: #{_forward.1} parent=0 // pred_region
    _
  $region5: #{_forward.1} parent=0 // pred_fallthru
    _
  // Predicated region
  $region6: #{_forward.1} parent=0 // pred_check
    _
  $region7: #{_forward.1} parent=0 // pred_check_branch
    %14 = sbr.rel (0) target = $region9
  $region8: #{_forward.1} parent=0 // pred_region
    _
  $region9: #{_forward.1} parent=0 // pred_fallthru
    _
  // Predicated region
  $region10: #{_forward.1} parent=0 // pred_check
    _
  $region11: #{_forward.1} parent=0 // pred_check_branch
    %16 = sbr.rel (0) target = $region13
  $region12: #{_forward.1} parent=0 // pred_region
    _
  $region13: #{_forward.1} parent=0 // pred_fallthru
    _
  // Predicated region
  $region14: #{_forward.1} parent=0 // pred_check
    _
  $region15: #{_forward.1} parent=0 // pred_check_branch
    %18 = sbr.rel (0) target = $region17
  $region16: #{_forward.1} parent=0 // pred_region
    _
  $region17: #{_forward.1} parent=0 // pred_fallthru
    _
  // Predicated region
  $region18: #{_forward.1} parent=0 // pred_check
    _
  $region19: #{_forward.1} parent=0 // pred_check_branch
    %20 = sbr.rel (0) target = $region21
  $region20: #{_forward.1} parent=0 // pred_region
    _
  $region21: #{_forward.1} parent=0 // pred_fallthru
    _
  // Predicated region
  $region22: #{_forward.1} parent=0 // pred_check
    _
  $region23: #{_forward.1} parent=0 // pred_check_branch
    %22 = sbr.rel (0) target = $region25
  $region24: #{_forward.1} parent=0 // pred_region
    _
  $region25: #{_forward.1} parent=0 // pred_fallthru
    _
  %v23 = vld [vmem:[%s1] sm:$0xff]
  %v24 = vld [vmem:[%s1 + $0x8] sm:$0xff]
  %v25 = vld [vmem:[%s1 + $0x10] sm:$0xff]
  %v26 = vld [vmem:[%s1 + $0x18] sm:$0xff]
  %v27 = vld [vmem:[%s1 + $0x20] sm:$0xff]
  %v28 = vld [vmem:[%s1 + $0x28] sm:$0xff]
  %v29 = vld [vmem:[%s1 + $0x30] sm:$0xff]
  %v30 = vld [vmem:[%s1 + $0x38] sm:$0xff]
  %v31 = vld [vmem:[%s1 + $0x40] sm:$0xff]
  %v32 = vld [vmem:[%s1 + $0x48] sm:$0xff]
  %v33 = vld [vmem:[%s1 + $0x50] sm:$0xff]
  %v34 = vld [vmem:[%s1 + $0x58] sm:$0xff]
  %v35 = vld [vmem:[%s1 + $0x60] sm:$0xff]
  %v36 = vld [vmem:[%s1 + $0x68] sm:$0xff]
  %v37 = vld [vmem:[%s1 + $0x70] sm:$0xff]
  %v38 = vld [vmem:[%s1 + $0x78] sm:$0xff]
  %v39 = vld [vmem:[%s2] sm:$0xff]
  %v40 = vld [vmem:[%s2 + $0x8] sm:$0xff]
  %v41 = vld [vmem:[%s2 + $0x10] sm:$0xff]
  %v42 = vld [vmem:[%s2 + $0x18] sm:$0xff]
  %v43 = vld [vmem:[%s2 + $0x20] sm:$0xff]
  %v44 = vld [vmem:[%s2 + $0x28] sm:$0xff]
  %v45 = vld [vmem:[%s2 + $0x30] sm:$0xff]
  %v46 = vld [vmem:[%s2 + $0x38] sm:$0xff]
  %v47 = vld [vmem:[%s2 + $0x40] sm:$0xff]
  %v48 = vld [vmem:[%s2 + $0x48] sm:$0xff]
  %v49 = vld [vmem:[%s2 + $0x50] sm:$0xff]
  %v50 = vld [vmem:[%s2 + $0x58] sm:$0xff]
  %v51 = vld [vmem:[%s2 + $0x60] sm:$0xff]
  %v52 = vld [vmem:[%s2 + $0x68] sm:$0xff]
  %v53 = vld [vmem:[%s2 + $0x70] sm:$0xff]
  %v54 = vld [vmem:[%s2 + $0x78] sm:$0xff]
  %55 = vmatpush.msra.mxu0 %v54
  %56 = vmatpush.msra.mxu0 %v53
  %57 = vmatpush.msra.mxu0 %v52
  %58 = vmatpush.msra.mxu0 %v51
  %59 = vmatpush.msra.mxu0 %v50
  %60 = vmatpush.msra.mxu0 %v49
  %61 = vmatpush.msra.mxu0 %v48
  %62 = vmatpush.msra.mxu0 %v47
  %63 = vmatpush.msra.mxu0 %v46
  %64 = vmatpush.msra.mxu0 %v45
  %65 = vmatpush.msra.mxu0 %v44
  %66 = vmatpush.msra.mxu0 %v43
  %67 = vmatpush.msra.mxu0 %v42
  %68 = vmatpush.msra.mxu0 %v41
  %69 = vmatpush.msra.mxu0 %v40
  %70 = vmatpush.msra.mxu0 %v39
  %71 = vmatmul.f32.gmra.mxu0 %v23
  %v72 = vpop.f32.mrf.mxu0
  %v73 = vadd.f32 0.0, %v72
  %74 = vmatmul.f32.gmra.mxu0 %v24
  %v75 = vpop.f32.mrf.mxu0
  %v76 = vadd.f32 0.0, %v75
  %77 = vmatmul.f32.gmra.mxu0 %v25
  %v78 = vpop.f32.mrf.mxu0
  %v79 = vadd.f32 0.0, %v78
  %80 = vmatmul.f32.gmra.mxu0 %v26
  %v81 = vpop.f32.mrf.mxu0
  %v82 = vadd.f32 0.0, %v81
  %83 = vmatmul.f32.gmra.mxu0 %v27
  %v84 = vpop.f32.mrf.mxu0
  %v85 = vadd.f32 0.0, %v84
  %86 = vmatmul.f32.gmra.mxu0 %v28
  %v87 = vpop.f32.mrf.mxu0
  %v88 = vadd.f32 0.0, %v87
  %89 = vmatmul.f32.gmra.mxu0 %v29
  %v90 = vpop.f32.mrf.mxu0
  %v91 = vadd.f32 0.0, %v90
  %92 = vmatmul.f32.gmra.mxu0 %v30
  %v93 = vpop.f32.mrf.mxu0
  %v94 = vadd.f32 0.0, %v93
  %95 = vmatmul.f32.gmra.mxu0 %v31
  %v96 = vpop.f32.mrf.mxu0
  %v97 = vadd.f32 0.0, %v96
  %98 = vmatmul.f32.gmra.mxu0 %v32
  %v99 = vpop.f32.mrf.mxu0
  %v100 = vadd.f32 0.0, %v99
  %101 = vmatmul.f32.gmra.mxu0 %v33
  %v102 = vpop.f32.mrf.mxu0
  %v103 = vadd.f32 0.0, %v102
  %104 = vmatmul.f32.gmra.mxu0 %v34
  %v105 = vpop.f32.mrf.mxu0
  %v106 = vadd.f32 0.0, %v105
  %107 = vmatmul.f32.gmra.mxu0 %v35
  %v108 = vpop.f32.mrf.mxu0
  %v109 = vadd.f32 0.0, %v108
  %110 = vmatmul.f32.gmra.mxu0 %v36
  %v111 = vpop.f32.mrf.mxu0
  %v112 = vadd.f32 0.0, %v111
  %113 = vmatmul.f32.gmra.mxu0 %v37
  %v114 = vpop.f32.mrf.mxu0
  %v115 = vadd.f32 0.0, %v114
  %116 = vmatmul.f32.gmra.mxu0 %v38
  %v117 = vpop.f32.mrf.mxu0
  %v118 = vadd.f32 0.0, %v117
  %119 = vdwg.mxu0
  %v120 = vld [vmem:[%s0] sm:$0xff]
  %v121 = vld [vmem:[%s0 + $0x8] sm:$0xff]
  %v122 = vld [vmem:[%s0 + $0x10] sm:$0xff]
  %v123 = vld [vmem:[%s0 + $0x18] sm:$0xff]
  %v124 = vld [vmem:[%s0 + $0x20] sm:$0xff]
  %v125 = vld [vmem:[%s0 + $0x28] sm:$0xff]
  %v126 = vld [vmem:[%s0 + $0x30] sm:$0xff]
  %v127 = vld [vmem:[%s0 + $0x38] sm:$0xff]
  %v128 = vld [vmem:[%s0 + $0x40] sm:$0xff]
  %v129 = vld [vmem:[%s0 + $0x48] sm:$0xff]
  %v130 = vld [vmem:[%s0 + $0x50] sm:$0xff]
  %v131 = vld [vmem:[%s0 + $0x58] sm:$0xff]
  %v132 = vld [vmem:[%s0 + $0x60] sm:$0xff]
  %v133 = vld [vmem:[%s0 + $0x68] sm:$0xff]
  %v134 = vld [vmem:[%s0 + $0x70] sm:$0xff]
  %v135 = vld [vmem:[%s0 + $0x78] sm:$0xff]
  %v136 = vld [vmem:[%s3] sm:$0x1]
  %v138 = vperm.slane %v136, 0
  %140 = vmatpush.msra.mxu0 %v118
  %141 = vmatpush.msra.mxu0 %v115
  %142 = vmatpush.msra.mxu0 %v112
  %143 = vmatpush.msra.mxu0 %v109
  %144 = vmatpush.msra.mxu0 %v106
  %145 = vmatpush.msra.mxu0 %v103
  %146 = vmatpush.msra.mxu0 %v100
  %147 = vmatpush.msra.mxu0 %v97
  %148 = vmatpush.msra.mxu0 %v94
  %149 = vmatpush.msra.mxu0 %v91
  %150 = vmatpush.msra.mxu0 %v88
  %151 = vmatpush.msra.mxu0 %v85
  %152 = vmatpush.msra.mxu0 %v82
  %153 = vmatpush.msra.mxu0 %v79
  %154 = vmatpush.msra.mxu0 %v76
  %155 = vmatpush.msra.mxu0 %v73
  %156 = vmatmul.f32.gmra.mxu0 %v120
  %v157 = vpop.f32.mrf.mxu0
  %v158 = vadd.f32 %v138, %v157
  %159 = vmatmul.f32.gmra.mxu0 %v121
  %v160 = vpop.f32.mrf.mxu0
  %v161 = vadd.f32 %v138, %v160
  %162 = vmatmul.f32.gmra.mxu0 %v122
  %v163 = vpop.f32.mrf.mxu0
  %v164 = vadd.f32 %v138, %v163
  %165 = vmatmul.f32.gmra.mxu0 %v123
  %v166 = vpop.f32.mrf.mxu0
  %v167 = vadd.f32 %v138, %v166
  %168 = vmatmul.f32.gmra.mxu0 %v124
  %v169 = vpop.f32.mrf.mxu0
  %v170 = vadd.f32 %v138, %v169
  %171 = vmatmul.f32.gmra.mxu0 %v125
  %v172 = vpop.f32.mrf.mxu0
  %v173 = vadd.f32 %v138, %v172
  %174 = vmatmul.f32.gmra.mxu0 %v126
  %v175 = vpop.f32.mrf.mxu0
  %v176 = vadd.f32 %v138, %v175
  %177 = vmatmul.f32.gmra.mxu0 %v127
  %v178 = vpop.f32.mrf.mxu0
  %v179 = vadd.f32 %v138, %v178
  %180 = vmatmul.f32.gmra.mxu0 %v128
  %v181 = vpop.f32.mrf.mxu0
  %v182 = vadd.f32 %v138, %v181
  %183 = vmatmul.f32.gmra.mxu0 %v129
  %v184 = vpop.f32.mrf.mxu0
  %v185 = vadd.f32 %v138, %v184
  %186 = vmatmul.f32.gmra.mxu0 %v130
  %v187 = vpop.f32.mrf.mxu0
  %v188 = vadd.f32 %v138, %v187
  %189 = vmatmul.f32.gmra.mxu0 %v131
  %v190 = vpop.f32.mrf.mxu0
  %v191 = vadd.f32 %v138, %v190
  %192 = vmatmul.f32.gmra.mxu0 %v132
  %v193 = vpop.f32.mrf.mxu0
  %v194 = vadd.f32 %v138, %v193
  %195 = vmatmul.f32.gmra.mxu0 %v133
  %v196 = vpop.f32.mrf.mxu0
  %v197 = vadd.f32 %v138, %v196
  %198 = vmatmul.f32.gmra.mxu0 %v134
  %v199 = vpop.f32.mrf.mxu0
  %v200 = vadd.f32 %v138, %v199
  %201 = vmatmul.f32.gmra.mxu0 %v135
  %v202 = vpop.f32.mrf.mxu0
  %v203 = vadd.f32 %v138, %v202
  %204 = vdwg.mxu0
  %v205 = vmax.f32 %v158, 0.0
  %v206 = vmax.f32 %v161, 0.0
  %v207 = vmax.f32 %v164, 0.0
  %v208 = vmax.f32 %v167, 0.0
  %v209 = vmax.f32 %v170, 0.0
  %v210 = vmax.f32 %v173, 0.0
  %v211 = vmax.f32 %v176, 0.0
  %v212 = vmax.f32 %v179, 0.0
  %v213 = vmax.f32 %v182, 0.0
  %v214 = vmax.f32 %v185, 0.0
  %v215 = vmax.f32 %v188, 0.0
  %v216 = vmax.f32 %v191, 0.0
  %v217 = vmax.f32 %v194, 0.0
  %v218 = vmax.f32 %v197, 0.0
  %v219 = vmax.f32 %v200, 0.0
  %v220 = vmax.f32 %v203, 0.0
  %v221 = vld [vmem:[%s4] sm:$0xff]
  %v222 = vld [vmem:[%s4 + $0x8] sm:$0xff]
  %v223 = vld [vmem:[%s4 + $0x10] sm:$0xff]
  %v224 = vld [vmem:[%s4 + $0x18] sm:$0xff]
  %v225 = vld [vmem:[%s4 + $0x20] sm:$0xff]
  %v226 = vld [vmem:[%s4 + $0x28] sm:$0xff]
  %v227 = vld [vmem:[%s4 + $0x30] sm:$0xff]
  %v228 = vld [vmem:[%s4 + $0x38] sm:$0xff]
  %v229 = vld [vmem:[%s4 + $0x40] sm:$0xff]
  %v230 = vld [vmem:[%s4 + $0x48] sm:$0xff]
  %v231 = vld [vmem:[%s4 + $0x50] sm:$0xff]
  %v232 = vld [vmem:[%s4 + $0x58] sm:$0xff]
  %v233 = vld [vmem:[%s4 + $0x60] sm:$0xff]
  %v234 = vld [vmem:[%s4 + $0x68] sm:$0xff]
  %v235 = vld [vmem:[%s4 + $0x70] sm:$0xff]
  %v236 = vld [vmem:[%s4 + $0x78] sm:$0xff]
  %237 = vmatpush.msra.mxu0 %v236
  %238 = vmatpush.msra.mxu0 %v235
  %239 = vmatpush.msra.mxu0 %v234
  %240 = vmatpush.msra.mxu0 %v233
  %241 = vmatpush.msra.mxu0 %v232
  %242 = vmatpush.msra.mxu0 %v231
  %243 = vmatpush.msra.mxu0 %v230
  %244 = vmatpush.msra.mxu0 %v229
  %245 = vmatpush.msra.mxu0 %v228
  %246 = vmatpush.msra.mxu0 %v227
  %247 = vmatpush.msra.mxu0 %v226
  %248 = vmatpush.msra.mxu0 %v225
  %249 = vmatpush.msra.mxu0 %v224
  %250 = vmatpush.msra.mxu0 %v223
  %251 = vmatpush.msra.mxu0 %v222
  %252 = vmatpush.msra.mxu0 %v221
  %253 = vmatmul.f32.gmra.mxu0 %v205
  %v254 = vpop.f32.mrf.mxu0
  %v255 = vadd.f32 0.0, %v254
  %256 = vmatmul.f32.gmra.mxu0 %v206
  %v257 = vpop.f32.mrf.mxu0
  %v258 = vadd.f32 0.0, %v257
  %259 = vmatmul.f32.gmra.mxu0 %v207
  %v260 = vpop.f32.mrf.mxu0
  %v261 = vadd.f32 0.0, %v260
  %262 = vmatmul.f32.gmra.mxu0 %v208
  %v263 = vpop.f32.mrf.mxu0
  %v264 = vadd.f32 0.0, %v263
  %265 = vmatmul.f32.gmra.mxu0 %v209
  %v266 = vpop.f32.mrf.mxu0
  %v267 = vadd.f32 0.0, %v266
  %268 = vmatmul.f32.gmra.mxu0 %v210
  %v269 = vpop.f32.mrf.mxu0
  %v270 = vadd.f32 0.0, %v269
  %271 = vmatmul.f32.gmra.mxu0 %v211
  %v272 = vpop.f32.mrf.mxu0
  %v273 = vadd.f32 0.0, %v272
  %274 = vmatmul.f32.gmra.mxu0 %v212
  %v275 = vpop.f32.mrf.mxu0
  %v276 = vadd.f32 0.0, %v275
  %277 = vmatmul.f32.gmra.mxu0 %v213
  %v278 = vpop.f32.mrf.mxu0
  %v279 = vadd.f32 0.0, %v278
  %280 = vmatmul.f32.gmra.mxu0 %v214
  %v281 = vpop.f32.mrf.mxu0
  %v282 = vadd.f32 0.0, %v281
  %283 = vmatmul.f32.gmra.mxu0 %v215
  %v284 = vpop.f32.mrf.mxu0
  %v285 = vadd.f32 0.0, %v284
  %286 = vmatmul.f32.gmra.mxu0 %v216
  %v287 = vpop.f32.mrf.mxu0
  %v288 = vadd.f32 0.0, %v287
  %289 = vmatmul.f32.gmra.mxu0 %v217
  %v290 = vpop.f32.mrf.mxu0
  %v291 = vadd.f32 0.0, %v290
  %292 = vmatmul.f32.gmra.mxu0 %v218
  %v293 = vpop.f32.mrf.mxu0
  %v294 = vadd.f32 0.0, %v293
  %295 = vmatmul.f32.gmra.mxu0 %v219
  %v296 = vpop.f32.mrf.mxu0
  %v297 = vadd.f32 0.0, %v296
  %298 = vmatmul.f32.gmra.mxu0 %v220
  %v299 = vpop.f32.mrf.mxu0
  %v300 = vadd.f32 0.0, %v299
  %301 = vdwg.mxu0
  %v302 = vld [vmem:[%s5] sm:$0x1]
  %v304 = vperm.slane %v302, 0
  %306 = vmatpush.msra.mxu0 %v300
  %307 = vmatpush.msra.mxu0 %v297
  %308 = vmatpush.msra.mxu0 %v294
  %309 = vmatpush.msra.mxu0 %v291
  %310 = vmatpush.msra.mxu0 %v288
  %311 = vmatpush.msra.mxu0 %v285
  %312 = vmatpush.msra.mxu0 %v282
  %313 = vmatpush.msra.mxu0 %v279
  %314 = vmatpush.msra.mxu0 %v276
  %315 = vmatpush.msra.mxu0 %v273
  %316 = vmatpush.msra.mxu0 %v270
  %317 = vmatpush.msra.mxu0 %v267
  %318 = vmatpush.msra.mxu0 %v264
  %319 = vmatpush.msra.mxu0 %v261
  %320 = vmatpush.msra.mxu0 %v258
  %321 = vmatpush.msra.mxu0 %v255
  %322 = vmatmul.f32.gmra.mxu0 %v120
  %v323 = vpop.f32.mrf.mxu0
  %v324 = vadd.f32 %v304, %v323
  %325 = vmatmul.f32.gmra.mxu0 %v121
  %v326 = vpop.f32.mrf.mxu0
  %v327 = vadd.f32 %v304, %v326
  %328 = vmatmul.f32.gmra.mxu0 %v122
  %v329 = vpop.f32.mrf.mxu0
  %v330 = vadd.f32 %v304, %v329
  %331 = vmatmul.f32.gmra.mxu0 %v123
  %v332 = vpop.f32.mrf.mxu0
  %v333 = vadd.f32 %v304, %v332
  %334 = vmatmul.f32.gmra.mxu0 %v124
  %v335 = vpop.f32.mrf.mxu0
  %v336 = vadd.f32 %v304, %v335
  %337 = vmatmul.f32.gmra.mxu0 %v125
  %v338 = vpop.f32.mrf.mxu0
  %v339 = vadd.f32 %v304, %v338
  %340 = vmatmul.f32.gmra.mxu0 %v126
  %v341 = vpop.f32.mrf.mxu0
  %v342 = vadd.f32 %v304, %v341
  %343 = vmatmul.f32.gmra.mxu0 %v127
  %v344 = vpop.f32.mrf.mxu0
  %v345 = vadd.f32 %v304, %v344
  %346 = vmatmul.f32.gmra.mxu0 %v128
  %v347 = vpop.f32.mrf.mxu0
  %v348 = vadd.f32 %v304, %v347
  %349 = vmatmul.f32.gmra.mxu0 %v129
  %v350 = vpop.f32.mrf.mxu0
  %v351 = vadd.f32 %v304, %v350
  %352 = vmatmul.f32.gmra.mxu0 %v130
  %v353 = vpop.f32.mrf.mxu0
  %v354 = vadd.f32 %v304, %v353
  %355 = vmatmul.f32.gmra.mxu0 %v131
  %v356 = vpop.f32.mrf.mxu0
  %v357 = vadd.f32 %v304, %v356
  %358 = vmatmul.f32.gmra.mxu0 %v132
  %v359 = vpop.f32.mrf.mxu0
  %v360 = vadd.f32 %v304, %v359
  %361 = vmatmul.f32.gmra.mxu0 %v133
  %v362 = vpop.f32.mrf.mxu0
  %v363 = vadd.f32 %v304, %v362
  %364 = vmatmul.f32.gmra.mxu0 %v134
  %v365 = vpop.f32.mrf.mxu0
  %v366 = vadd.f32 %v304, %v365
  %367 = vmatmul.f32.gmra.mxu0 %v135
  %v368 = vpop.f32.mrf.mxu0
  %v369 = vadd.f32 %v304, %v368
  %370 = vdwg.mxu0
  %371 = vst [vmem:[%s6] sm:$0xff] %v324
  %372 = vst [vmem:[%s6 + $0x8] sm:$0xff] %v327
  %373 = vst [vmem:[%s6 + $0x10] sm:$0xff] %v330
  %374 = vst [vmem:[%s6 + $0x18] sm:$0xff] %v333
  %375 = vst [vmem:[%s6 + $0x20] sm:$0xff] %v336
  %376 = vst [vmem:[%s6 + $0x28] sm:$0xff] %v339
  %377 = vst [vmem:[%s6 + $0x30] sm:$0xff] %v342
  %378 = vst [vmem:[%s6 + $0x38] sm:$0xff] %v345
  %379 = vst [vmem:[%s6 + $0x40] sm:$0xff] %v348
  %380 = vst [vmem:[%s6 + $0x48] sm:$0xff] %v351
  %381 = vst [vmem:[%s6 + $0x50] sm:$0xff] %v354
  %382 = vst [vmem:[%s6 + $0x58] sm:$0xff] %v357
  %383 = vst [vmem:[%s6 + $0x60] sm:$0xff] %v360
  %384 = vst [vmem:[%s6 + $0x68] sm:$0xff] %v363
  %385 = vst [vmem:[%s6 + $0x70] sm:$0xff] %v366
  %386 = vst [vmem:[%s6 + $0x78] sm:$0xff] %v369
  // Predicated region
  $region26: #{_forward.1} parent=0 // pred_check
    _
  $region27: #{_forward.1} parent=0 // pred_check_branch
    %388 = sbr.rel (0) target = $region29
  $region28: #{_forward.1} parent=0 // pred_region
    _
  $region29: #{_forward.1} parent=0 // pred_fallthru
    _
  // Predicated region
  $region30: #{_forward.1} parent=0 // pred_check
    _
  $region31: #{_forward.1} parent=0 // pred_check_branch
    %390 = sbr.rel (0) target = $region33
  $region32: #{_forward.1} parent=0 // pred_region
    _
  $region33: #{_forward.1} parent=0 // pred_fallthru
    _

</llo_original>
